<compile_context>
chip_gen: v7x
topology: tpu7x:2x2x1
jax: 0.10.0
libtpu: 0.0.40
codegen_flags: <defaults>
</compile_context>

<pallas_src>
import functools
import math

import jax
import jax.numpy as jnp
from jax.experimental import pallas as pl
from jax.experimental.pallas import tpu as pltpu


_LANE = 128
_VMEM_BUDGET = 28 << 20      # target tile footprint (safe on v5e/v6e/v7x)
_VMEM_LIMIT_CAP = 48 << 20   # never request more than this scoped VMEM

_M_TILES = (1024, 512, 256, 128)   # large tm => weight reuse (v6e HBM roofline)
_N_TILES = (512, 256, 128)         # prefer 256-multiples (2x256x256 MXU)
_K_TILES = (512, 256, 128)         # tk <= 512 keeps double-buffer headroom


# ---------------------------------------------------------------------------
# helpers
# ---------------------------------------------------------------------------
def _round_up(x, m):
    return ((x + m - 1) // m) * m


def _pick_tile(dim, candidates):
    """Largest candidate (all 128-multiples) that evenly divides `dim`.
    `dim` is always a multiple of 128 here and 128 is in every candidate list."""
    for c in candidates:
        if dim % c == 0:
            return c
    return _LANE


def _choose_m(M):
    """Pad M to a multiple of a reasonably large tile.  tm is floored at 128
    (fill the MXU rows even for decode-size M); prefer the largest tm whose
    padding waste stays under ~12.5%."""
    Mr = _round_up(max(M, 1), _LANE)
    for tm in _M_TILES:
        Mp = _round_up(Mr, tm)
        if (Mp - M) * 8 <= Mp:
            return Mp, tm
    return Mr, _LANE


def _gateup_vmem_bytes(tm, tk, tn, e_in, e_out):
    return (2 * tm * tk * e_in        # x block (double-buffered)
            + 4 * tk * tn * e_in      # w1 + w3 blocks (double-buffered)
            + 2 * tm * tn * e_out     # h output block (double-buffered)
            + 2 * tm * tn * 4)        # two f32 accumulators


def _matmul_vmem_bytes(tm, tk, tn, e_in, e_out):
    return (2 * tm * tk * e_in
            + 2 * tk * tn * e_in
            + 2 * tm * tn * e_out
            + tm * tn * 4)            # f32 accumulator


def _shrink_to_budget(tm, tk, tn, footprint_fn):
    """Halve tk, then tn, then tm until the footprint fits the VMEM budget.
    Halving a 128*2^k tile keeps it a divisor of the (128-aligned) dim."""
    while footprint_fn(tm, tk, tn) > _VMEM_BUDGET:
        if tk > _LANE:
            tk //= 2
        elif tn > _LANE:
            tn //= 2
        elif tm > _LANE:
            tm //= 2
        else:
            break
    return tm, tk, tn


def _vmem_limit(footprint):
    return min(max(int(footprint * 1.25) + (2 << 20), 16 << 20), _VMEM_LIMIT_CAP)


# ---------------------------------------------------------------------------
# Kernel 1: fused gate/up projections + SwiGLU epilogue
#   h = silu(x @ W1) * (x @ W3)
#   grid = (M/tm, d_ff/tn, d_model/tk)   -- reduction (K = d_model) last
# ---------------------------------------------------------------------------
def _swiglu_gateup_kernel(x_ref, w1_ref, w3_ref, h_ref, acc_g_ref, acc_u_ref,
                          *, approx_recip):
    k = pl.program_id(2)

    @pl.when(k == 0)
    def _():
        acc_g_ref[...] = jnp.zeros_like(acc_g_ref)
        acc_u_ref[...] = jnp.zeros_like(acc_u_ref)

    x = x_ref[...]
    acc_g_ref[...] += jnp.dot(x, w1_ref[...], preferred_element_type=jnp.float32)
    acc_u_ref[...] += jnp.dot(x, w3_ref[...], preferred_element_type=jnp.float32)

    @pl.when(k == pl.num_programs(2) - 1)
    def _():
        g = acc_g_ref[...]
        denom = 1.0 + jnp.exp(-g)                       # exp -> EUP
        if approx_recip:
            sig = pl.reciprocal(denom, approx=True)     # EUP slot, ~free
        else:
            sig = 1.0 / denom                           # exact (f32 path)
        h_ref[...] = (g * sig * acc_u_ref[...]).astype(h_ref.dtype)


def _gateup_call(x2d, w1, w3, h_dtype, *, tm, tk, tn):
    M, K = x2d.shape
    _, N = w1.shape
    grid = (M // tm, N // tn, K // tk)
    e_in = x2d.dtype.itemsize
    e_out = jnp.dtype(h_dtype).itemsize

    footprint = _gateup_vmem_bytes(tm, tk, tn, e_in, e_out)
    cost = pl.CostEstimate(
        flops=4 * M * K * N + 4 * M * N,
        transcendentals=M * N,
        bytes_accessed=(grid[1] * M * K * e_in          # x re-read per j
                        + 2 * grid[0] * K * N * e_in    # w1, w3 re-read per i
                        + M * N * e_out),               # h written once
    )

    approx = jnp.dtype(h_dtype) == jnp.dtype(jnp.bfloat16)
    kernel = functools.partial(_swiglu_gateup_kernel, approx_recip=approx)

    return pl.pallas_call(
        kernel,
        out_shape=jax.ShapeDtypeStruct((M, N), h_dtype),
        grid_spec=pltpu.PrefetchScalarGridSpec(
            num_scalar_prefetch=0,
            grid=grid,
            in_specs=[
                pl.BlockSpec((tm, tk), lambda i, j, k: (i, k)),
                pl.BlockSpec((tk, tn), lambda i, j, k: (k, j)),
                pl.BlockSpec((tk, tn), lambda i, j, k: (k, j)),
            ],
            out_specs=pl.BlockSpec((tm, tn), lambda i, j, k: (i, j)),
            scratch_shapes=[
                pltpu.VMEM((tm, tn), jnp.float32),
                pltpu.VMEM((tm, tn), jnp.float32),
            ],
        ),
        compiler_params=pltpu.CompilerParams(
            dimension_semantics=("parallel", "parallel", "arbitrary"),
            vmem_limit_bytes=_vmem_limit(footprint),
        ),
        cost_estimate=cost,
    )(x2d, w1, w3)


# ---------------------------------------------------------------------------
# Kernel 2: tiled matmul for the down projection (h @ W2)
# ---------------------------------------------------------------------------
def _matmul_kernel(a_ref, b_ref, o_ref, acc_ref):
    k = pl.program_id(2)

    @pl.when(k == 0)
    def _():
        acc_ref[...] = jnp.zeros_like(acc_ref)

    acc_ref[...] += jnp.dot(a_ref[...], b_ref[...],
                            preferred_element_type=jnp.float32)

    @pl.when(k == pl.num_programs(2) - 1)
    def _():
        o_ref[...] = acc_ref[...].astype(o_ref.dtype)


def _matmul_call(a, b, out_dtype, *, tm, tk, tn):
    M, K = a.shape
    _, N = b.shape
    grid = (M // tm, N // tn, K // tk)
    e_in = a.dtype.itemsize
    e_out = jnp.dtype(out_dtype).itemsize

    footprint = _matmul_vmem_bytes(tm, tk, tn, e_in, e_out)
    cost = pl.CostEstimate(
        flops=2 * M * K * N,
        transcendentals=0,
        bytes_accessed=(grid[1] * M * K * e_in
                        + grid[0] * K * N * e_in
                        + M * N * e_out),
    )

    return pl.pallas_call(
        _matmul_kernel,
        out_shape=jax.ShapeDtypeStruct((M, N), out_dtype),
        grid_spec=pltpu.PrefetchScalarGridSpec(
            num_scalar_prefetch=0,
            grid=grid,
            in_specs=[
                pl.BlockSpec((tm, tk), lambda i, j, k: (i, k)),
                pl.BlockSpec((tk, tn), lambda i, j, k: (k, j)),
            ],
            out_specs=pl.BlockSpec((tm, tn), lambda i, j, k: (i, j)),
            scratch_shapes=[pltpu.VMEM((tm, tn), jnp.float32)],
        ),
        compiler_params=pltpu.CompilerParams(
            dimension_semantics=("parallel", "parallel", "arbitrary"),
            vmem_limit_bytes=_vmem_limit(footprint),
        ),
        cost_estimate=cost,
    )(a, b)


# ---------------------------------------------------------------------------
# SwiGLU FFN forward  (equivalent to SwiGLUFeedForwardNet.forward)
# ---------------------------------------------------------------------------
def swiglu_ffn_forward(x, w1, w3, w2, *, compute_dtype=None):
    """out = (silu(x @ W1) * (x @ W3)) @ W2.

    x: (..., d_model); w1,w3: (d_model, d_ff); w2: (d_ff, d_model).
    compute_dtype:
      None          -> compute in x.dtype (numerically matches the torch module).
      jnp.bfloat16  -> bf16 MXU operands + bf16 `h` intermediate, f32 accumulation
                       (recommended performance config on TPU).
    The output dtype always matches x.dtype.
    """
    d_model, d_ff = w1.shape
    out_dtype = x.dtype
    cdt = jnp.dtype(compute_dtype) if compute_dtype is not None else jnp.dtype(x.dtype)

    lead = x.shape[:-1]
    x2d = x.reshape(-1, d_model).astype(cdt)
    M = x2d.shape[0]

    w1c = w1.astype(cdt)
    w3c = w3.astype(cdt)
    w2c = w2.astype(cdt)

    # --- pad every dim to a multiple of 128 (robustness: no unaligned full-dim
    # fallback blocks).  Zero padding is exact: padded K rows / d_ff columns
    # contribute nothing, padded M rows / d_model columns are sliced off. ------
    Kp = _round_up(d_model, _LANE)
    Fp = _round_up(d_ff, _LANE)
    Mp, tm = _choose_m(M)

    if (Mp, Kp) != (M, d_model):
        x2d = jnp.zeros((Mp, Kp), cdt).at[:M, :d_model].set(x2d)
    if Kp != d_model or Fp != d_ff:
        w1c = jnp.zeros((Kp, Fp), cdt).at[:d_model, :d_ff].set(w1c)
        w3c = jnp.zeros((Kp, Fp), cdt).at[:d_model, :d_ff].set(w3c)
        w2c = jnp.zeros((Fp, Kp), cdt).at[:d_ff, :d_model].set(w2c)

    # h (M x d_ff intermediate) stays in the compute dtype: bf16 halves the
    # dominant inter-kernel HBM traffic and feeds the MXU natively in stage 2.
    h_dtype = cdt
    e_in = cdt.itemsize
    e_h = jnp.dtype(h_dtype).itemsize
    e_out = jnp.dtype(out_dtype).itemsize

    # stage-1 tiles: reduce over d_model (Kp), output d_ff (Fp)
    tk1 = _pick_tile(Kp, _K_TILES)
    tn1 = _pick_tile(Fp, _N_TILES)
    tm1, tk1, tn1 = _shrink_to_budget(
        tm, tk1, tn1, lambda a, b, c: _gateup_vmem_bytes(a, b, c, e_in, e_h))

    # stage-2 tiles: reduce over d_ff (Fp), output d_model (Kp)
    tk2 = _pick_tile(Fp, _K_TILES)
    tn2 = _pick_tile(Kp, _N_TILES)
    tm2, tk2, tn2 = _shrink_to_budget(
        tm, tk2, tn2, lambda a, b, c: _matmul_vmem_bytes(a, b, c, e_h, e_out))

    # Stage 1: h = silu(x @ W1) * (x @ W3)   (single fused kernel)
    h = _gateup_call(x2d, w1c, w3c, h_dtype, tm=tm1, tk=tk1, tn=tn1)
    # Stage 2: out = h @ W2
    out2d = _matmul_call(h, w2c, out_dtype, tm=tm2, tk=tk2, tn=tn2)

    if Mp != M or Kp != d_model:
        out2d = out2d[:M, :d_model]
    return out2d.reshape(*lead, d_model)


# ---------------------------------------------------------------------------
# Parameter init matching the PyTorch module
# ---------------------------------------------------------------------------
def init_linear_params(key, in_features, out_features, dtype=jnp.float32):
    # nn.init.trunc_normal_(mean=0, std=sqrt(2/(in+out)), a=-3*std, b=3*std)
    std = math.sqrt(2.0 / (in_features + out_features))
    w = jax.random.truncated_normal(
        key, lower=-3.0, upper=3.0,
        shape=(in_features, out_features), dtype=jnp.float32,
    ) * std
    return w.astype(dtype)


def init_swiglu_params(key, d_model, d_ff, dtype=jnp.float32):
    k1, k2, k3 = jax.random.split(key, 3)
    w1 = init_linear_params(k1, d_model, d_ff, dtype)   # gate proj
    w3 = init_linear_params(k2, d_model, d_ff, dtype)   # up proj
    w2 = init_linear_params(k3, d_ff, d_model, dtype)   # down proj
    return w1, w3, w2


if __name__ == "__main__":
    key = jax.random.PRNGKey(0)
    k_params, k_x = jax.random.split(key)

    batch, seq, d_model, d_ff = 2, 8, 128, 256

    w1, w3, w2 = init_swiglu_params(k_params, d_model, d_ff, dtype=jnp.float32)
    x = jax.random.normal(k_x, (batch, seq, d_model), dtype=jnp.float32)

    # Reference (PyTorch semantics): W2 @ (sigmoid(W1 x) * (W1 x) * (W3 x))
    g = jnp.matmul(x, w1)
    u = jnp.matmul(x, w3)
    ref = jnp.matmul(jax.nn.sigmoid(g) * g * u, w2)

    # 1) exact-dtype path (f32 compute) -- matches the torch module numerics.
    out_f32 = jax.block_until_ready(swiglu_ffn_forward(x, w1, w3, w2))
    assert out_f32.shape == (batch, seq, d_model)
    assert jnp.allclose(out_f32, ref, atol=2e-4, rtol=2e-4), (
        float(jnp.max(jnp.abs(out_f32 - ref))))

    # 2) bf16 MXU path (recommended perf config: bf16 operands + bf16 h,
    #    f32 accumulation) -- loose tolerance vs the f32 reference.
    out_bf16 = jax.block_until_ready(
        swiglu_ffn_forward(x, w1, w3, w2, compute_dtype=jnp.bfloat16))
    assert out_bf16.shape == (batch, seq, d_model)
    assert jnp.allclose(out_bf16.astype(jnp.float32), ref, atol=8e-2, rtol=8e-2), (
        float(jnp.max(jnp.abs(out_bf16.astype(jnp.float32) - ref))))

    print("KERNEL_OK")
</pallas_src>

<mosaic_0001>
module attributes {stable_mosaic.version = 11 : i64} {
  func.func @_swiglu_gateup_kernel(%arg0: i32, %arg1: i32, %arg2: i32, %arg3: memref<128x128xf32, #tpu.memory_space<vmem>>, %arg4: memref<128x256xf32, #tpu.memory_space<vmem>>, %arg5: memref<128x256xf32, #tpu.memory_space<vmem>>, %arg6: memref<128x256xf32, #tpu.memory_space<vmem>>, %arg7: memref<128x256xf32, #tpu.memory_space<vmem>>, %arg8: memref<128x256xf32, #tpu.memory_space<vmem>>) attributes {dimension_semantics = [#tpu.dimension_semantics<parallel>, #tpu.dimension_semantics<parallel>, #tpu.dimension_semantics<arbitrary>], iteration_bounds = array<i64: 1, 1, 1>, scalar_prefetch = 0 : i64, scratch_operands = 2 : i64, tpu.core_type = #tpu.core_type<tc>, window_params = [{transform_indices = @transform_0, window_bounds = array<i64: 128, 128>}, {transform_indices = @transform_1, window_bounds = array<i64: 128, 256>}, {transform_indices = @transform_2, window_bounds = array<i64: 128, 256>}, {transform_indices = @transform_3, window_bounds = array<i64: 128, 256>}]} {
    %c0_i32 = arith.constant 0 : i32
    %0 = arith.cmpi eq, %arg2, %c0_i32 : i32
    %1 = arith.extui %0 : i1 to i32
    %c0_i32_0 = arith.constant 0 : i32
    %2 = arith.cmpi ne, %1, %c0_i32_0 : i32
    scf.if %2 {
      %cst_17 = arith.constant 0.000000e+00 : f32
      %17 = vector.broadcast %cst_17 : f32 to vector<128x256xf32>
      %c0_18 = arith.constant 0 : index
      %c0_19 = arith.constant 0 : index
      %18 = vector.load %arg7[%c0_18, %c0_19] : memref<128x256xf32, #tpu.memory_space<vmem>>, vector<128x256xf32>
      tpu.vector_store %arg7[%c0_18, %c0_19], %17 {strides = array<i32>} : memref<128x256xf32, #tpu.memory_space<vmem>>, vector<128x256xf32>,
      %cst_20 = arith.constant 0.000000e+00 : f32
      %19 = vector.broadcast %cst_20 : f32 to vector<128x256xf32>
      %c0_21 = arith.constant 0 : index
      %c0_22 = arith.constant 0 : index
      %20 = vector.load %arg8[%c0_21, %c0_22] : memref<128x256xf32, #tpu.memory_space<vmem>>, vector<128x256xf32>
      tpu.vector_store %arg8[%c0_21, %c0_22], %19 {strides = array<i32>} : memref<128x256xf32, #tpu.memory_space<vmem>>, vector<128x256xf32>,
    } else {
    }
    %c0 = arith.constant 0 : index
    %c0_1 = arith.constant 0 : index
    %3 = vector.load %arg3[%c0, %c0_1] : memref<128x128xf32, #tpu.memory_space<vmem>>, vector<128x128xf32>
    %c0_2 = arith.constant 0 : index
    %c0_3 = arith.constant 0 : index
    %4 = vector.load %arg7[%c0_2, %c0_3] : memref<128x256xf32, #tpu.memory_space<vmem>>, vector<128x256xf32>
    %c0_4 = arith.constant 0 : index
    %c0_5 = arith.constant 0 : index
    %5 = vector.load %arg4[%c0_4, %c0_5] : memref<128x256xf32, #tpu.memory_space<vmem>>, vector<128x256xf32>
    %cst = arith.constant dense<0.000000e+00> : vector<128x256xf32>
    %6 = tpu.matmul %3, %5, %cst {dimension_numbers = #tpu.dot_dimension_numbers<[1], [0], [0], [1], [0, 0, 1, 1], [], []>} : vector<128x128xf32>, vector<128x256xf32>, vector<128x256xf32> -> vector<128x256xf32>
    %7 = arith.addf %4, %6 : vector<128x256xf32>
    %c0_6 = arith.constant 0 : index
    %c0_7 = arith.constant 0 : index
    %8 = vector.load %arg7[%c0_6, %c0_7] : memref<128x256xf32, #tpu.memory_space<vmem>>, vector<128x256xf32>
    tpu.vector_store %arg7[%c0_6, %c0_7], %7 {strides = array<i32>} : memref<128x256xf32, #tpu.memory_space<vmem>>, vector<128x256xf32>,
    %c0_8 = arith.constant 0 : index
    %c0_9 = arith.constant 0 : index
    %9 = vector.load %arg8[%c0_8, %c0_9] : memref<128x256xf32, #tpu.memory_space<vmem>>, vector<128x256xf32>
    %c0_10 = arith.constant 0 : index
    %c0_11 = arith.constant 0 : index
    %10 = vector.load %arg5[%c0_10, %c0_11] : memref<128x256xf32, #tpu.memory_space<vmem>>, vector<128x256xf32>
    %cst_12 = arith.constant dense<0.000000e+00> : vector<128x256xf32>
    %11 = tpu.matmul %3, %10, %cst_12 {dimension_numbers = #tpu.dot_dimension_numbers<[1], [0], [0], [1], [0, 0, 1, 1], [], []>} : vector<128x128xf32>, vector<128x256xf32>, vector<128x256xf32> -> vector<128x256xf32>
    %12 = arith.addf %9, %11 : vector<128x256xf32>
    %c0_13 = arith.constant 0 : index
    %c0_14 = arith.constant 0 : index
    %13 = vector.load %arg8[%c0_13, %c0_14] : memref<128x256xf32, #tpu.memory_space<vmem>>, vector<128x256xf32>
    tpu.vector_store %arg8[%c0_13, %c0_14], %12 {strides = array<i32>} : memref<128x256xf32, #tpu.memory_space<vmem>>, vector<128x256xf32>,
    %c0_i32_15 = arith.constant 0 : i32
    %14 = arith.cmpi eq, %arg2, %c0_i32_15 : i32
    %15 = arith.extui %14 : i1 to i32
    %c0_i32_16 = arith.constant 0 : i32
    %16 = arith.cmpi ne, %15, %c0_i32_16 : i32
    scf.if %16 {
      %c0_17 = arith.constant 0 : index
      %c0_18 = arith.constant 0 : index
      %17 = vector.load %arg7[%c0_17, %c0_18] : memref<128x256xf32, #tpu.memory_space<vmem>>, vector<128x256xf32>
      %cst_19 = arith.constant 0.000000e+00 : f32
      %18 = vector.broadcast %cst_19 : f32 to vector<128x256xf32>
      %19 = arith.subf %18, %17 : vector<128x256xf32>
      %20 = math.exp %19 : vector<128x256xf32>
      %cst_20 = arith.constant 1.000000e+00 : f32
      %21 = vector.broadcast %cst_20 : f32 to vector<128x256xf32>
      %22 = arith.addf %21, %20 : vector<128x256xf32>
      %cst_21 = arith.constant 1.000000e+00 : f32
      %23 = vector.broadcast %cst_21 : f32 to vector<128x256xf32>
      %24 = arith.divf %23, %22 : vector<128x256xf32>
      %25 = arith.mulf %17, %24 : vector<128x256xf32>
      %c0_22 = arith.constant 0 : index
      %c0_23 = arith.constant 0 : index
      %26 = vector.load %arg8[%c0_22, %c0_23] : memref<128x256xf32, #tpu.memory_space<vmem>>, vector<128x256xf32>
      %27 = arith.mulf %25, %26 : vector<128x256xf32>
      %c0_24 = arith.constant 0 : index
      %c0_25 = arith.constant 0 : index
      %28 = vector.load %arg6[%c0_24, %c0_25] : memref<128x256xf32, #tpu.memory_space<vmem>>, vector<128x256xf32>
      tpu.vector_store %arg6[%c0_24, %c0_25], %27 {strides = array<i32>} : memref<128x256xf32, #tpu.memory_space<vmem>>, vector<128x256xf32>,
    } else {
    }
    return
  }
  func.func @transform_0(%arg0: i32, %arg1: i32, %arg2: i32) -> (i32, i32) {
    %c0_i32 = arith.constant 0 : i32
    return %arg0, %arg2 : i32, i32
  }
  func.func @transform_1(%arg0: i32, %arg1: i32, %arg2: i32) -> (i32, i32) {
    %c0_i32 = arith.constant 0 : i32
    return %arg2, %arg1 : i32, i32
  }
  func.func @transform_2(%arg0: i32, %arg1: i32, %arg2: i32) -> (i32, i32) {
    %c0_i32 = arith.constant 0 : i32
    return %arg2, %arg1 : i32, i32
  }
  func.func @transform_3(%arg0: i32, %arg1: i32, %arg2: i32) -> (i32, i32) {
    %c0_i32 = arith.constant 0 : i32
    return %arg0, %arg1 : i32, i32
  }
}

</mosaic_0001>

<llo_original>
// kernel: tpu_custom_call.1
$region0: #{tpu_custom_call.1}
  #allocation0 [shape = 'u32[]', space=smem, size = 0x4, offset = 0x4, fixed_abs, tag = 'smem constant byte address 0x4 - core index']
  #allocation1 [shape = 'u32[144,128]{1,0:T(1,128)}', space=vmem, size = 0x12000, scoped, tag = 'internal scratch']
  #allocation2 [shape = 'f32[128,256]{1,0:T(8,128)}', space=vmem, size = 0x20000, scoped, tag = 'scratch operand']
  #allocation3 [shape = 'f32[128,256]{1,0:T(8,128)}', space=vmem, size = 0x20000, scoped, tag = 'scratch operand']
  %s0 = inlined_call_operand.hbm [shape: f32[128,128], index: 0, kind: input, shape index: {}]
  %s1 = inlined_call_operand.hbm [shape: f32[128,256], index: 1, kind: input, shape index: {}]
  %s2 = inlined_call_operand.hbm [shape: f32[128,256], index: 2, kind: input, shape index: {}]
  %s3 = inlined_call_operand.hbm [shape: f32[128,256], index: 3, kind: output, shape index: {}]
  %s4 = sld [smem:[#allocation0]]
  $region42: #{tpu_custom_call.1} parent=0
    _
  %s6 = ssub.s32 1, %s4
  %s7 = scalar_select 0, %s6, %s4
  $region1: #{tpu_custom_call.1} parent=0
    #allocation4 [shape = 'u8[65536]{0}', space=vmem, size = 0x10000, scoped, tag = 'input window, operand 0, single buffered']
    #allocation5 [shape = 's32[1]{0}', space=sflag, size = 0x4, scoped, tag = 'scoped memory for tpu_custom_call.1']
    #allocation6 [shape = 's32[1]{0}', space=sflag, size = 0x4, scoped, tag = 'scoped memory for tpu_custom_call.1']
    #allocation7 [shape = 'u8[131072]{0}', space=vmem, size = 0x20000, scoped, tag = 'input window, operand 1, single buffered']
    #allocation8 [shape = 's32[1]{0}', space=sflag, size = 0x4, scoped, tag = 'scoped memory for tpu_custom_call.1']
    #allocation9 [shape = 'u8[131072]{0}', space=vmem, size = 0x20000, scoped, tag = 'input window, operand 2, single buffered']
    #allocation10 [shape = 'u8[131072]{0}', space=vmem, size = 0x20000, scoped, tag = 'output window, operand 0, single buffered']
    %8 = vsyncpa [#allocation5], 0
    %9 = vsyncpa [#allocation8], 0
    %10 = vsyncpa [#allocation6], 0
    // Predicated region
    $region2: #{tpu_custom_call.1} parent=1 // pred_check
      _
    $region3: #{tpu_custom_call.1} parent=1 // pred_check_branch
      %12 = sbr.rel (0) target = $region5
    $region4: #{tpu_custom_call.1} parent=1 // pred_region
      %s14 = ssub.s32 2048, 2048
      %15 = vsyncadd [#allocation5], %s14
      %s16 = sshll.u32 [#allocation4], 4
      %s17 = int_to_ptr.vmem [resolvable:$true] %s16
      %22 = dma.hbm_to_vmem [thread:$0]  %s0, 2048, %s17, [#allocation5], 128, 128, 8
    $region5: #{tpu_custom_call.1} parent=1 // pred_fallthru
      _
    // Predicated region
    $region6: #{tpu_custom_call.1} parent=1 // pred_check
      _
    $region7: #{tpu_custom_call.1} parent=1 // pred_check_branch
      %24 = sbr.rel (0) target = $region9
    $region8: #{tpu_custom_call.1} parent=1 // pred_region
      %s26 = ssub.s32 4096, 4096
      %27 = vsyncadd [#allocation8], %s26
      %s28 = sshll.u32 [#allocation7], 4
      %s29 = int_to_ptr.vmem [resolvable:$true] %s28
      %34 = dma.hbm_to_vmem [thread:$0]  %s1, 4096, %s29, [#allocation8], 256, 256, 16
    $region9: #{tpu_custom_call.1} parent=1 // pred_fallthru
      _
    // Predicated region
    $region10: #{tpu_custom_call.1} parent=1 // pred_check
      _
    $region11: #{tpu_custom_call.1} parent=1 // pred_check_branch
      %36 = sbr.rel (0) target = $region13
    $region12: #{tpu_custom_call.1} parent=1 // pred_region
      %s38 = ssub.s32 4096, 4096
      %39 = vsyncadd [#allocation8], %s38
      %s40 = sshll.u32 [#allocation9], 4
      %s41 = int_to_ptr.vmem [resolvable:$true] %s40
      %46 = dma.hbm_to_vmem [thread:$0]  %s2, 4096, %s41, [#allocation8], 256, 256, 16
    $region13: #{tpu_custom_call.1} parent=1 // pred_fallthru
      _
    // Predicated region
    $region14: #{tpu_custom_call.1} parent=1 // pred_check
      _
    $region15: #{tpu_custom_call.1} parent=1 // pred_check_branch
      %48 = sbr.rel (0) target = $region17
    $region16: #{tpu_custom_call.1} parent=1 // pred_region
      %49 = dma.done [#allocation5], 2048
    $region17: #{tpu_custom_call.1} parent=1 // pred_fallthru
      _
    // Predicated region
    $region18: #{tpu_custom_call.1} parent=1 // pred_check
      _
    $region19: #{tpu_custom_call.1} parent=1 // pred_check_branch
      %51 = sbr.rel (0) target = $region21
    $region20: #{tpu_custom_call.1} parent=1 // pred_region
      %52 = dma.done [#allocation8], 4096
    $region21: #{tpu_custom_call.1} parent=1 // pred_fallthru
      _
    // Predicated region
    $region22: #{tpu_custom_call.1} parent=1 // pred_check
      _
    $region23: #{tpu_custom_call.1} parent=1 // pred_check_branch
      %54 = sbr.rel (0) target = $region25
    $region24: #{tpu_custom_call.1} parent=1 // pred_region
      %55 = dma.done [#allocation8], 4096
    $region25: #{tpu_custom_call.1} parent=1 // pred_fallthru
      _
    %p56 = scmp.eq.s32.totalorder 0, 0
    // Predicated region
    $region26: #{tpu_custom_call.1} parent=1 // pred_check
      %p57 = pneg %p56
    $region27: #{tpu_custom_call.1} parent=1 // pred_check_branch
      %59 = sbr.rel (%p57) target = $region29
    $region28: #{tpu_custom_call.1} parent=1 // pred_region
      %60 = vst [vmem:[#allocation2] sm:$0xff] 0.0
      %61 = vst [vmem:[#allocation2 + $0x8] sm:$0xff] 0.0
      %62 = vst [vmem:[#allocation2 + $0x10] sm:$0xff] 0.0
      %63 = vst [vmem:[#allocation2 + $0x18] sm:$0xff] 0.0
      %64 = vst [vmem:[#allocation2 + $0x20] sm:$0xff] 0.0
      %65 = vst [vmem:[#allocation2 + $0x28] sm:$0xff] 0.0
      %66 = vst [vmem:[#allocation2 + $0x30] sm:$0xff] 0.0
      %67 = vst [vmem:[#allocation2 + $0x38] sm:$0xff] 0.0
      %68 = vst [vmem:[#allocation2 + $0x40] sm:$0xff] 0.0
      %69 = vst [vmem:[#allocation2 + $0x48] sm:$0xff] 0.0
      %70 = vst [vmem:[#allocation2 + $0x50] sm:$0xff] 0.0
      %71 = vst [vmem:[#allocation2 + $0x58] sm:$0xff] 0.0
      %72 = vst [vmem:[#allocation2 + $0x60] sm:$0xff] 0.0
      %73 = vst [vmem:[#allocation2 + $0x68] sm:$0xff] 0.0
      %74 = vst [vmem:[#allocation2 + $0x70] sm:$0xff] 0.0
      %75 = vst [vmem:[#allocation2 + $0x78] sm:$0xff] 0.0
      %76 = vst [vmem:[#allocation2 + $0x80] sm:$0xff] 0.0
      %77 = vst [vmem:[#allocation2 + $0x88] sm:$0xff] 0.0
      %78 = vst [vmem:[#allocation2 + $0x90] sm:$0xff] 0.0
      %79 = vst [vmem:[#allocation2 + $0x98] sm:$0xff] 0.0
      %80 = vst [vmem:[#allocation2 + $0xa0] sm:$0xff] 0.0
      %81 = vst [vmem:[#allocation2 + $0xa8] sm:$0xff] 0.0
      %82 = vst [vmem:[#allocation2 + $0xb0] sm:$0xff] 0.0
      %83 = vst [vmem:[#allocation2 + $0xb8] sm:$0xff] 0.0
      %84 = vst [vmem:[#allocation2 + $0xc0] sm:$0xff] 0.0
      %85 = vst [vmem:[#allocation2 + $0xc8] sm:$0xff] 0.0
      %86 = vst [vmem:[#allocation2 + $0xd0] sm:$0xff] 0.0
      %87 = vst [vmem:[#allocation2 + $0xd8] sm:$0xff] 0.0
      %88 = vst [vmem:[#allocation2 + $0xe0] sm:$0xff] 0.0
      %89 = vst [vmem:[#allocation2 + $0xe8] sm:$0xff] 0.0
      %90 = vst [vmem:[#allocation2 + $0xf0] sm:$0xff] 0.0
      %91 = vst [vmem:[#allocation2 + $0xf8] sm:$0xff] 0.0
      %92 = vst [vmem:[#allocation3] sm:$0xff] 0.0
      %93 = vst [vmem:[#allocation3 + $0x8] sm:$0xff] 0.0
      %94 = vst [vmem:[#allocation3 + $0x10] sm:$0xff] 0.0
      %95 = vst [vmem:[#allocation3 + $0x18] sm:$0xff] 0.0
      %96 = vst [vmem:[#allocation3 + $0x20] sm:$0xff] 0.0
      %97 = vst [vmem:[#allocation3 + $0x28] sm:$0xff] 0.0
      %98 = vst [vmem:[#allocation3 + $0x30] sm:$0xff] 0.0
      %99 = vst [vmem:[#allocation3 + $0x38] sm:$0xff] 0.0
      %100 = vst [vmem:[#allocation3 + $0x40] sm:$0xff] 0.0
      %101 = vst [vmem:[#allocation3 + $0x48] sm:$0xff] 0.0
      %102 = vst [vmem:[#allocation3 + $0x50] sm:$0xff] 0.0
      %103 = vst [vmem:[#allocation3 + $0x58] sm:$0xff] 0.0
      %104 = vst [vmem:[#allocation3 + $0x60] sm:$0xff] 0.0
      %105 = vst [vmem:[#allocation3 + $0x68] sm:$0xff] 0.0
      %106 = vst [vmem:[#allocation3 + $0x70] sm:$0xff] 0.0
      %107 = vst [vmem:[#allocation3 + $0x78] sm:$0xff] 0.0
      %108 = vst [vmem:[#allocation3 + $0x80] sm:$0xff] 0.0
      %109 = vst [vmem:[#allocation3 + $0x88] sm:$0xff] 0.0
      %110 = vst [vmem:[#allocation3 + $0x90] sm:$0xff] 0.0
      %111 = vst [vmem:[#allocation3 + $0x98] sm:$0xff] 0.0
      %112 = vst [vmem:[#allocation3 + $0xa0] sm:$0xff] 0.0
      %113 = vst [vmem:[#allocation3 + $0xa8] sm:$0xff] 0.0
      %114 = vst [vmem:[#allocation3 + $0xb0] sm:$0xff] 0.0
      %115 = vst [vmem:[#allocation3 + $0xb8] sm:$0xff] 0.0
      %116 = vst [vmem:[#allocation3 + $0xc0] sm:$0xff] 0.0
      %117 = vst [vmem:[#allocation3 + $0xc8] sm:$0xff] 0.0
      %118 = vst [vmem:[#allocation3 + $0xd0] sm:$0xff] 0.0
      %119 = vst [vmem:[#allocation3 + $0xd8] sm:$0xff] 0.0
      %120 = vst [vmem:[#allocation3 + $0xe0] sm:$0xff] 0.0
      %121 = vst [vmem:[#allocation3 + $0xe8] sm:$0xff] 0.0
      %122 = vst [vmem:[#allocation3 + $0xf0] sm:$0xff] 0.0
      %123 = vst [vmem:[#allocation3 + $0xf8] sm:$0xff] 0.0
    $region29: #{tpu_custom_call.1} parent=1 // pred_fallthru
      _
    %v124 = vld [vmem:[#allocation4] sm:$0xff]
    %v125 = vld [vmem:[#allocation4 + $0x8] sm:$0xff]
    %v126 = vld [vmem:[#allocation4 + $0x10] sm:$0xff]
    %v127 = vld [vmem:[#allocation4 + $0x18] sm:$0xff]
    %v128 = vld [vmem:[#allocation4 + $0x20] sm:$0xff]
    %v129 = vld [vmem:[#allocation4 + $0x28] sm:$0xff]
    %v130 = vld [vmem:[#allocation4 + $0x30] sm:$0xff]
    %v131 = vld [vmem:[#allocation4 + $0x38] sm:$0xff]
    %v132 = vld [vmem:[#allocation4 + $0x40] sm:$0xff]
    %v133 = vld [vmem:[#allocation4 + $0x48] sm:$0xff]
    %v134 = vld [vmem:[#allocation4 + $0x50] sm:$0xff]
    %v135 = vld [vmem:[#allocation4 + $0x58] sm:$0xff]
    %v136 = vld [vmem:[#allocation4 + $0x60] sm:$0xff]
    %v137 = vld [vmem:[#allocation4 + $0x68] sm:$0xff]
    %v138 = vld [vmem:[#allocation4 + $0x70] sm:$0xff]
    %v139 = vld [vmem:[#allocation4 + $0x78] sm:$0xff]
    %v140 = vld [vmem:[#allocation2] sm:$0xff]
    %v141 = vld [vmem:[#allocation2 + $0x8] sm:$0xff]
    %v142 = vld [vmem:[#allocation2 + $0x10] sm:$0xff]
    %v143 = vld [vmem:[#allocation2 + $0x18] sm:$0xff]
    %v144 = vld [vmem:[#allocation2 + $0x20] sm:$0xff]
    %v145 = vld [vmem:[#allocation2 + $0x28] sm:$0xff]
    %v146 = vld [vmem:[#allocation2 + $0x30] sm:$0xff]
    %v147 = vld [vmem:[#allocation2 + $0x38] sm:$0xff]
    %v148 = vld [vmem:[#allocation2 + $0x40] sm:$0xff]
    %v149 = vld [vmem:[#allocation2 + $0x48] sm:$0xff]
    %v150 = vld [vmem:[#allocation2 + $0x50] sm:$0xff]
    %v151 = vld [vmem:[#allocation2 + $0x58] sm:$0xff]
    %v152 = vld [vmem:[#allocation2 + $0x60] sm:$0xff]
    %v153 = vld [vmem:[#allocation2 + $0x68] sm:$0xff]
    %v154 = vld [vmem:[#allocation2 + $0x70] sm:$0xff]
    %v155 = vld [vmem:[#allocation2 + $0x78] sm:$0xff]
    %v156 = vld [vmem:[#allocation2 + $0x80] sm:$0xff]
    %v157 = vld [vmem:[#allocation2 + $0x88] sm:$0xff]
    %v158 = vld [vmem:[#allocation2 + $0x90] sm:$0xff]
    %v159 = vld [vmem:[#allocation2 + $0x98] sm:$0xff]
    %v160 = vld [vmem:[#allocation2 + $0xa0] sm:$0xff]
    %v161 = vld [vmem:[#allocation2 + $0xa8] sm:$0xff]
    %v162 = vld [vmem:[#allocation2 + $0xb0] sm:$0xff]
    %v163 = vld [vmem:[#allocation2 + $0xb8] sm:$0xff]
    %v164 = vld [vmem:[#allocation2 + $0xc0] sm:$0xff]
    %v165 = vld [vmem:[#allocation2 + $0xc8] sm:$0xff]
    %v166 = vld [vmem:[#allocation2 + $0xd0] sm:$0xff]
    %v167 = vld [vmem:[#allocation2 + $0xd8] sm:$0xff]
    %v168 = vld [vmem:[#allocation2 + $0xe0] sm:$0xff]
    %v169 = vld [vmem:[#allocation2 + $0xe8] sm:$0xff]
    %v170 = vld [vmem:[#allocation2 + $0xf0] sm:$0xff]
    %v171 = vld [vmem:[#allocation2 + $0xf8] sm:$0xff]
    %v172 = vld [vmem:[#allocation7] sm:$0xff]
    %v173 = vld [vmem:[#allocation7 + $0x8] sm:$0xff]
    %v174 = vld [vmem:[#allocation7 + $0x10] sm:$0xff]
    %v175 = vld [vmem:[#allocation7 + $0x18] sm:$0xff]
    %v176 = vld [vmem:[#allocation7 + $0x20] sm:$0xff]
    %v177 = vld [vmem:[#allocation7 + $0x28] sm:$0xff]
    %v178 = vld [vmem:[#allocation7 + $0x30] sm:$0xff]
    %v179 = vld [vmem:[#allocation7 + $0x38] sm:$0xff]
    %v180 = vld [vmem:[#allocation7 + $0x40] sm:$0xff]
    %v181 = vld [vmem:[#allocation7 + $0x48] sm:$0xff]
    %v182 = vld [vmem:[#allocation7 + $0x50] sm:$0xff]
    %v183 = vld [vmem:[#allocation7 + $0x58] sm:$0xff]
    %v184 = vld [vmem:[#allocation7 + $0x60] sm:$0xff]
    %v185 = vld [vmem:[#allocation7 + $0x68] sm:$0xff]
    %v186 = vld [vmem:[#allocation7 + $0x70] sm:$0xff]
    %v187 = vld [vmem:[#allocation7 + $0x78] sm:$0xff]
    %v188 = vld [vmem:[#allocation7 + $0x80] sm:$0xff]
    %v189 = vld [vmem:[#allocation7 + $0x88] sm:$0xff]
    %v190 = vld [vmem:[#allocation7 + $0x90] sm:$0xff]
    %v191 = vld [vmem:[#allocation7 + $0x98] sm:$0xff]
    %v192 = vld [vmem:[#allocation7 + $0xa0] sm:$0xff]
    %v193 = vld [vmem:[#allocation7 + $0xa8] sm:$0xff]
    %v194 = vld [vmem:[#allocation7 + $0xb0] sm:$0xff]
    %v195 = vld [vmem:[#allocation7 + $0xb8] sm:$0xff]
    %v196 = vld [vmem:[#allocation7 + $0xc0] sm:$0xff]
    %v197 = vld [vmem:[#allocation7 + $0xc8] sm:$0xff]
    %v198 = vld [vmem:[#allocation7 + $0xd0] sm:$0xff]
    %v199 = vld [vmem:[#allocation7 + $0xd8] sm:$0xff]
    %v200 = vld [vmem:[#allocation7 + $0xe0] sm:$0xff]
    %v201 = vld [vmem:[#allocation7 + $0xe8] sm:$0xff]
    %v202 = vld [vmem:[#allocation7 + $0xf0] sm:$0xff]
    %v203 = vld [vmem:[#allocation7 + $0xf8] sm:$0xff]
    %204 = vmatprep.subr.mxu0 %v173
    %205 = vmatpush1.msra.mxu0 %v172
    %206 = vmatprep.subr.mxu0 %v175
    %207 = vmatpush1.msra.mxu0 %v174
    %208 = vmatprep.subr.mxu0 %v177
    %209 = vmatpush1.msra.mxu0 %v176
    %210 = vmatprep.subr.mxu0 %v179
    %211 = vmatpush1.msra.mxu0 %v178
    %212 = vmatprep.subr.mxu0 %v181
    %213 = vmatpush1.msra.mxu0 %v180
    %214 = vmatprep.subr.mxu0 %v183
    %215 = vmatpush1.msra.mxu0 %v182
    %216 = vmatprep.subr.mxu0 %v185
    %217 = vmatpush1.msra.mxu0 %v184
    %218 = vmatprep.subr.mxu0 %v187
    %219 = vmatpush1.msra.mxu0 %v186
    %220 = vmatprep.subr.mxu0 %v189
    %221 = vmatpush1.msra.mxu0 %v188
    %222 = vmatprep.subr.mxu0 %v191
    %223 = vmatpush1.msra.mxu0 %v190
    %224 = vmatprep.subr.mxu0 %v193
    %225 = vmatpush1.msra.mxu0 %v192
    %226 = vmatprep.subr.mxu0 %v195
    %227 = vmatpush1.msra.mxu0 %v194
    %228 = vmatprep.subr.mxu0 %v197
    %229 = vmatpush1.msra.mxu0 %v196
    %230 = vmatprep.subr.mxu0 %v199
    %231 = vmatpush1.msra.mxu0 %v198
    %232 = vmatprep.subr.mxu0 %v201
    %233 = vmatpush1.msra.mxu0 %v200
    %234 = vmatprep.subr.mxu0 %v203
    %235 = vmatpush1.msra.mxu0 %v202
    %236 = vmatprep.subr.mxu0 0.0
    %237 = vmatpush1.msra.mxu0 0.0
    %238 = vmatprep.subr.mxu0 0.0
    %239 = vmatpush1.msra.mxu0 0.0
    %240 = vmatprep.subr.mxu0 0.0
    %241 = vmatpush1.msra.mxu0 0.0
    %242 = vmatprep.subr.mxu0 0.0
    %243 = vmatpush1.msra.mxu0 0.0
    %244 = vmatprep.subr.mxu0 0.0
    %245 = vmatpush1.msra.mxu0 0.0
    %246 = vmatprep.subr.mxu0 0.0
    %247 = vmatpush1.msra.mxu0 0.0
    %248 = vmatprep.subr.mxu0 0.0
    %249 = vmatpush1.msra.mxu0 0.0
    %250 = vmatprep.subr.mxu0 0.0
    %251 = vmatpush1.msra.mxu0 0.0
    %252 = vmatprep.subr.mxu0 0.0
    %253 = vmatpush1.msra.mxu0 0.0
    %254 = vmatprep.subr.mxu0 0.0
    %255 = vmatpush1.msra.mxu0 0.0
    %256 = vmatprep.subr.mxu0 0.0
    %257 = vmatpush1.msra.mxu0 0.0
    %258 = vmatprep.subr.mxu0 0.0
    %259 = vmatpush1.msra.mxu0 0.0
    %260 = vmatprep.subr.mxu0 0.0
    %261 = vmatpush1.msra.mxu0 0.0
    %262 = vmatprep.subr.mxu0 0.0
    %263 = vmatpush1.msra.mxu0 0.0
    %264 = vmatprep.subr.mxu0 0.0
    %265 = vmatpush1.msra.mxu0 0.0
    %266 = vmatprep.subr.mxu0 0.0
    %267 = vmatpush1.msra.mxu0 0.0
    %268 = vmatprep.mubr.f32.mxu0 0.0
    %269 = vmatmul.mubr.f32.gmra.mrb[0].mxu0 %v124
    %v270 = vpop.f32.mrb[0].mxu0
    %v271 = vadd.f32 0.0, %v270
    %v272 = vpop.f32.mrb[0].mxu0
    %v273 = vadd.f32 0.0, %v272
    %274 = vmatprep.mubr.f32.mxu0 0.0
    %275 = vmatmul.mubr.f32.gmra.mrb[0].mxu0 %v125
    %v276 = vpop.f32.mrb[0].mxu0
    %v277 = vadd.f32 0.0, %v276
    %v278 = vpop.f32.mrb[0].mxu0
    %v279 = vadd.f32 0.0, %v278
    %280 = vmatprep.mubr.f32.mxu0 0.0
    %281 = vmatmul.mubr.f32.gmra.mrb[0].mxu0 %v126
    %v282 = vpop.f32.mrb[0].mxu0
    %v283 = vadd.f32 0.0, %v282
    %v284 = vpop.f32.mrb[0].mxu0
    %v285 = vadd.f32 0.0, %v284
    %286 = vmatprep.mubr.f32.mxu0 0.0
    %287 = vmatmul.mubr.f32.gmra.mrb[0].mxu0 %v127
    %v288 = vpop.f32.mrb[0].mxu0
    %v289 = vadd.f32 0.0, %v288
    %v290 = vpop.f32.mrb[0].mxu0
    %v291 = vadd.f32 0.0, %v290
    %292 = vmatprep.mubr.f32.mxu0 0.0
    %293 = vmatmul.mubr.f32.gmra.mrb[0].mxu0 %v128
    %v294 = vpop.f32.mrb[0].mxu0
    %v295 = vadd.f32 0.0, %v294
    %v296 = vpop.f32.mrb[0].mxu0
    %v297 = vadd.f32 0.0, %v296
    %298 = vmatprep.mubr.f32.mxu0 0.0
    %299 = vmatmul.mubr.f32.gmra.mrb[0].mxu0 %v129
    %v300 = vpop.f32.mrb[0].mxu0
    %v301 = vadd.f32 0.0, %v300
    %v302 = vpop.f32.mrb[0].mxu0
    %v303 = vadd.f32 0.0, %v302
    %304 = vmatprep.mubr.f32.mxu0 0.0
    %305 = vmatmul.mubr.f32.gmra.mrb[0].mxu0 %v130
    %v306 = vpop.f32.mrb[0].mxu0
    %v307 = vadd.f32 0.0, %v306
    %v308 = vpop.f32.mrb[0].mxu0
    %v309 = vadd.f32 0.0, %v308
    %310 = vmatprep.mubr.f32.mxu0 0.0
    %311 = vmatmul.mubr.f32.gmra.mrb[0].mxu0 %v131
    %v312 = vpop.f32.mrb[0].mxu0
    %v313 = vadd.f32 0.0, %v312
    %v314 = vpop.f32.mrb[0].mxu0
    %v315 = vadd.f32 0.0, %v314
    %316 = vmatprep.mubr.f32.mxu0 0.0
    %317 = vmatmul.mubr.f32.gmra.mrb[0].mxu0 %v132
    %v318 = vpop.f32.mrb[0].mxu0
    %v319 = vadd.f32 0.0, %v318
    %v320 = vpop.f32.mrb[0].mxu0
    %v321 = vadd.f32 0.0, %v320
    %322 = vmatprep.mubr.f32.mxu0 0.0
    %323 = vmatmul.mubr.f32.gmra.mrb[0].mxu0 %v133
    %v324 = vpop.f32.mrb[0].mxu0
    %v325 = vadd.f32 0.0, %v324
    %v326 = vpop.f32.mrb[0].mxu0
    %v327 = vadd.f32 0.0, %v326
    %328 = vmatprep.mubr.f32.mxu0 0.0
    %329 = vmatmul.mubr.f32.gmra.mrb[0].mxu0 %v134
    %v330 = vpop.f32.mrb[0].mxu0
    %v331 = vadd.f32 0.0, %v330
    %v332 = vpop.f32.mrb[0].mxu0
    %v333 = vadd.f32 0.0, %v332
    %334 = vmatprep.mubr.f32.mxu0 0.0
    %335 = vmatmul.mubr.f32.gmra.mrb[0].mxu0 %v135
    %v336 = vpop.f32.mrb[0].mxu0
    %v337 = vadd.f32 0.0, %v336
    %v338 = vpop.f32.mrb[0].mxu0
    %v339 = vadd.f32 0.0, %v338
    %340 = vmatprep.mubr.f32.mxu0 0.0
    %341 = vmatmul.mubr.f32.gmra.mrb[0].mxu0 %v136
    %v342 = vpop.f32.mrb[0].mxu0
    %v343 = vadd.f32 0.0, %v342
    %v344 = vpop.f32.mrb[0].mxu0
    %v345 = vadd.f32 0.0, %v344
    %346 = vmatprep.mubr.f32.mxu0 0.0
    %347 = vmatmul.mubr.f32.gmra.mrb[0].mxu0 %v137
    %v348 = vpop.f32.mrb[0].mxu0
    %v349 = vadd.f32 0.0, %v348
    %v350 = vpop.f32.mrb[0].mxu0
    %v351 = vadd.f32 0.0, %v350
    %352 = vmatprep.mubr.f32.mxu0 0.0
    %353 = vmatmul.mubr.f32.gmra.mrb[0].mxu0 %v138
    %v354 = vpop.f32.mrb[0].mxu0
    %v355 = vadd.f32 0.0, %v354
    %v356 = vpop.f32.mrb[0].mxu0
    %v357 = vadd.f32 0.0, %v356
    %358 = vmatprep.mubr.f32.mxu0 0.0
    %359 = vmatmul.mubr.f32.gmra.mrb[0].mxu0 %v139
    %v360 = vpop.f32.mrb[0].mxu0
    %v361 = vadd.f32 0.0, %v360
    %v362 = vpop.f32.mrb[0].mxu0
    %v363 = vadd.f32 0.0, %v362
    %364 = vdwg.mxu0
    %v365 = vadd.f32 %v140, %v271
    %v366 = vadd.f32 %v141, %v273
    %v367 = vadd.f32 %v142, %v277
    %v368 = vadd.f32 %v143, %v279
    %v369 = vadd.f32 %v144, %v283
    %v370 = vadd.f32 %v145, %v285
    %v371 = vadd.f32 %v146, %v289
    %v372 = vadd.f32 %v147, %v291
    %v373 = vadd.f32 %v148, %v295
    %v374 = vadd.f32 %v149, %v297
    %v375 = vadd.f32 %v150, %v301
    %v376 = vadd.f32 %v151, %v303
    %v377 = vadd.f32 %v152, %v307
    %v378 = vadd.f32 %v153, %v309
    %v379 = vadd.f32 %v154, %v313
    %v380 = vadd.f32 %v155, %v315
    %v381 = vadd.f32 %v156, %v319
    %v382 = vadd.f32 %v157, %v321
    %v383 = vadd.f32 %v158, %v325
    %v384 = vadd.f32 %v159, %v327
    %v385 = vadd.f32 %v160, %v331
    %v386 = vadd.f32 %v161, %v333
    %v387 = vadd.f32 %v162, %v337
    %v388 = vadd.f32 %v163, %v339
    %v389 = vadd.f32 %v164, %v343
    %v390 = vadd.f32 %v165, %v345
    %v391 = vadd.f32 %v166, %v349
    %v392 = vadd.f32 %v167, %v351
    %v393 = vadd.f32 %v168, %v355
    %v394 = vadd.f32 %v169, %v357
    %v395 = vadd.f32 %v170, %v361
    %v396 = vadd.f32 %v171, %v363
    %397 = vst [vmem:[#allocation2] sm:$0xff] %v365
    %398 = vst [vmem:[#allocation2 + $0x8] sm:$0xff] %v366
    %399 = vst [vmem:[#allocation2 + $0x10] sm:$0xff] %v367
    %400 = vst [vmem:[#allocation2 + $0x18] sm:$0xff] %v368
    %401 = vst [vmem:[#allocation2 + $0x20] sm:$0xff] %v369
    %402 = vst [vmem:[#allocation2 + $0x28] sm:$0xff] %v370
    %403 = vst [vmem:[#allocation2 + $0x30] sm:$0xff] %v371
    %404 = vst [vmem:[#allocation2 + $0x38] sm:$0xff] %v372
    %405 = vst [vmem:[#allocation2 + $0x40] sm:$0xff] %v373
    %406 = vst [vmem:[#allocation2 + $0x48] sm:$0xff] %v374
    %407 = vst [vmem:[#allocation2 + $0x50] sm:$0xff] %v375
    %408 = vst [vmem:[#allocation2 + $0x58] sm:$0xff] %v376
    %409 = vst [vmem:[#allocation2 + $0x60] sm:$0xff] %v377
    %410 = vst [vmem:[#allocation2 + $0x68] sm:$0xff] %v378
    %411 = vst [vmem:[#allocation2 + $0x70] sm:$0xff] %v379
    %412 = vst [vmem:[#allocation2 + $0x78] sm:$0xff] %v380
    %413 = vst [vmem:[#allocation2 + $0x80] sm:$0xff] %v381
    %414 = vst [vmem:[#allocation2 + $0x88] sm:$0xff] %v382
    %415 = vst [vmem:[#allocation2 + $0x90] sm:$0xff] %v383
    %416 = vst [vmem:[#allocation2 + $0x98] sm:$0xff] %v384
    %417 = vst [vmem:[#allocation2 + $0xa0] sm:$0xff] %v385
    %418 = vst [vmem:[#allocation2 + $0xa8] sm:$0xff] %v386
    %419 = vst [vmem:[#allocation2 + $0xb0] sm:$0xff] %v387
    %420 = vst [vmem:[#allocation2 + $0xb8] sm:$0xff] %v388
    %421 = vst [vmem:[#allocation2 + $0xc0] sm:$0xff] %v389
    %422 = vst [vmem:[#allocation2 + $0xc8] sm:$0xff] %v390
    %423 = vst [vmem:[#allocation2 + $0xd0] sm:$0xff] %v391
    %424 = vst [vmem:[#allocation2 + $0xd8] sm:$0xff] %v392
    %425 = vst [vmem:[#allocation2 + $0xe0] sm:$0xff] %v393
    %426 = vst [vmem:[#allocation2 + $0xe8] sm:$0xff] %v394
    %427 = vst [vmem:[#allocation2 + $0xf0] sm:$0xff] %v395
    %428 = vst [vmem:[#allocation2 + $0xf8] sm:$0xff] %v396
    %v429 = vld [vmem:[#allocation3] sm:$0xff]
    %v430 = vld [vmem:[#allocation3 + $0x8] sm:$0xff]
    %v431 = vld [vmem:[#allocation3 + $0x10] sm:$0xff]
    %v432 = vld [vmem:[#allocation3 + $0x18] sm:$0xff]
    %v433 = vld [vmem:[#allocation3 + $0x20] sm:$0xff]
    %v434 = vld [vmem:[#allocation3 + $0x28] sm:$0xff]
    %v435 = vld [vmem:[#allocation3 + $0x30] sm:$0xff]
    %v436 = vld [vmem:[#allocation3 + $0x38] sm:$0xff]
    %v437 = vld [vmem:[#allocation3 + $0x40] sm:$0xff]
    %v438 = vld [vmem:[#allocation3 + $0x48] sm:$0xff]
    %v439 = vld [vmem:[#allocation3 + $0x50] sm:$0xff]
    %v440 = vld [vmem:[#allocation3 + $0x58] sm:$0xff]
    %v441 = vld [vmem:[#allocation3 + $0x60] sm:$0xff]
    %v442 = vld [vmem:[#allocation3 + $0x68] sm:$0xff]
    %v443 = vld [vmem:[#allocation3 + $0x70] sm:$0xff]
    %v444 = vld [vmem:[#allocation3 + $0x78] sm:$0xff]
    %v445 = vld [vmem:[#allocation3 + $0x80] sm:$0xff]
    %v446 = vld [vmem:[#allocation3 + $0x88] sm:$0xff]
    %v447 = vld [vmem:[#allocation3 + $0x90] sm:$0xff]
    %v448 = vld [vmem:[#allocation3 + $0x98] sm:$0xff]
    %v449 = vld [vmem:[#allocation3 + $0xa0] sm:$0xff]
    %v450 = vld [vmem:[#allocation3 + $0xa8] sm:$0xff]
    %v451 = vld [vmem:[#allocation3 + $0xb0] sm:$0xff]
    %v452 = vld [vmem:[#allocation3 + $0xb8] sm:$0xff]
    %v453 = vld [vmem:[#allocation3 + $0xc0] sm:$0xff]
    %v454 = vld [vmem:[#allocation3 + $0xc8] sm:$0xff]
    %v455 = vld [vmem:[#allocation3 + $0xd0] sm:$0xff]
    %v456 = vld [vmem:[#allocation3 + $0xd8] sm:$0xff]
    %v457 = vld [vmem:[#allocation3 + $0xe0] sm:$0xff]
    %v458 = vld [vmem:[#allocation3 + $0xe8] sm:$0xff]
    %v459 = vld [vmem:[#allocation3 + $0xf0] sm:$0xff]
    %v460 = vld [vmem:[#allocation3 + $0xf8] sm:$0xff]
    %v461 = vld [vmem:[#allocation9] sm:$0xff]
    %v462 = vld [vmem:[#allocation9 + $0x8] sm:$0xff]
    %v463 = vld [vmem:[#allocation9 + $0x10] sm:$0xff]
    %v464 = vld [vmem:[#allocation9 + $0x18] sm:$0xff]
    %v465 = vld [vmem:[#allocation9 + $0x20] sm:$0xff]
    %v466 = vld [vmem:[#allocation9 + $0x28] sm:$0xff]
    %v467 = vld [vmem:[#allocation9 + $0x30] sm:$0xff]
    %v468 = vld [vmem:[#allocation9 + $0x38] sm:$0xff]
    %v469 = vld [vmem:[#allocation9 + $0x40] sm:$0xff]
    %v470 = vld [vmem:[#allocation9 + $0x48] sm:$0xff]
    %v471 = vld [vmem:[#allocation9 + $0x50] sm:$0xff]
    %v472 = vld [vmem:[#allocation9 + $0x58] sm:$0xff]
    %v473 = vld [vmem:[#allocation9 + $0x60] sm:$0xff]
    %v474 = vld [vmem:[#allocation9 + $0x68] sm:$0xff]
    %v475 = vld [vmem:[#allocation9 + $0x70] sm:$0xff]
    %v476 = vld [vmem:[#allocation9 + $0x78] sm:$0xff]
    %v477 = vld [vmem:[#allocation9 + $0x80] sm:$0xff]
    %v478 = vld [vmem:[#allocation9 + $0x88] sm:$0xff]
    %v479 = vld [vmem:[#allocation9 + $0x90] sm:$0xff]
    %v480 = vld [vmem:[#allocation9 + $0x98] sm:$0xff]
    %v481 = vld [vmem:[#allocation9 + $0xa0] sm:$0xff]
    %v482 = vld [vmem:[#allocation9 + $0xa8] sm:$0xff]
    %v483 = vld [vmem:[#allocation9 + $0xb0] sm:$0xff]
    %v484 = vld [vmem:[#allocation9 + $0xb8] sm:$0xff]
    %v485 = vld [vmem:[#allocation9 + $0xc0] sm:$0xff]
    %v486 = vld [vmem:[#allocation9 + $0xc8] sm:$0xff]
    %v487 = vld [vmem:[#allocation9 + $0xd0] sm:$0xff]
    %v488 = vld [vmem:[#allocation9 + $0xd8] sm:$0xff]
    %v489 = vld [vmem:[#allocation9 + $0xe0] sm:$0xff]
    %v490 = vld [vmem:[#allocation9 + $0xe8] sm:$0xff]
    %v491 = vld [vmem:[#allocation9 + $0xf0] sm:$0xff]
    %v492 = vld [vmem:[#allocation9 + $0xf8] sm:$0xff]
    %493 = vmatprep.subr.mxu0 %v462
    %494 = vmatpush1.msra.mxu0 %v461
    %495 = vmatprep.subr.mxu0 %v464
    %496 = vmatpush1.msra.mxu0 %v463
    %497 = vmatprep.subr.mxu0 %v466
    %498 = vmatpush1.msra.mxu0 %v465
    %499 = vmatprep.subr.mxu0 %v468
    %500 = vmatpush1.msra.mxu0 %v467
    %501 = vmatprep.subr.mxu0 %v470
    %502 = vmatpush1.msra.mxu0 %v469
    %503 = vmatprep.subr.mxu0 %v472
    %504 = vmatpush1.msra.mxu0 %v471
    %505 = vmatprep.subr.mxu0 %v474
    %506 = vmatpush1.msra.mxu0 %v473
    %507 = vmatprep.subr.mxu0 %v476
    %508 = vmatpush1.msra.mxu0 %v475
    %509 = vmatprep.subr.mxu0 %v478
    %510 = vmatpush1.msra.mxu0 %v477
    %511 = vmatprep.subr.mxu0 %v480
    %512 = vmatpush1.msra.mxu0 %v479
    %513 = vmatprep.subr.mxu0 %v482
    %514 = vmatpush1.msra.mxu0 %v481
    %515 = vmatprep.subr.mxu0 %v484
    %516 = vmatpush1.msra.mxu0 %v483
    %517 = vmatprep.subr.mxu0 %v486
    %518 = vmatpush1.msra.mxu0 %v485
    %519 = vmatprep.subr.mxu0 %v488
    %520 = vmatpush1.msra.mxu0 %v487
    %521 = vmatprep.subr.mxu0 %v490
    %522 = vmatpush1.msra.mxu0 %v489
    %523 = vmatprep.subr.mxu0 %v492
    %524 = vmatpush1.msra.mxu0 %v491
    %525 = vmatprep.subr.mxu0 0.0
    %526 = vmatpush1.msra.mxu0 0.0
    %527 = vmatprep.subr.mxu0 0.0
    %528 = vmatpush1.msra.mxu0 0.0
    %529 = vmatprep.subr.mxu0 0.0
    %530 = vmatpush1.msra.mxu0 0.0
    %531 = vmatprep.subr.mxu0 0.0
    %532 = vmatpush1.msra.mxu0 0.0
    %533 = vmatprep.subr.mxu0 0.0
    %534 = vmatpush1.msra.mxu0 0.0
    %535 = vmatprep.subr.mxu0 0.0
    %536 = vmatpush1.msra.mxu0 0.0
    %537 = vmatprep.subr.mxu0 0.0
    %538 = vmatpush1.msra.mxu0 0.0
    %539 = vmatprep.subr.mxu0 0.0
    %540 = vmatpush1.msra.mxu0 0.0
    %541 = vmatprep.subr.mxu0 0.0
    %542 = vmatpush1.msra.mxu0 0.0
    %543 = vmatprep.subr.mxu0 0.0
    %544 = vmatpush1.msra.mxu0 0.0
    %545 = vmatprep.subr.mxu0 0.0
    %546 = vmatpush1.msra.mxu0 0.0
    %547 = vmatprep.subr.mxu0 0.0
    %548 = vmatpush1.msra.mxu0 0.0
    %549 = vmatprep.subr.mxu0 0.0
    %550 = vmatpush1.msra.mxu0 0.0
    %551 = vmatprep.subr.mxu0 0.0
    %552 = vmatpush1.msra.mxu0 0.0
    %553 = vmatprep.subr.mxu0 0.0
    %554 = vmatpush1.msra.mxu0 0.0
    %555 = vmatprep.subr.mxu0 0.0
    %556 = vmatpush1.msra.mxu0 0.0
    %557 = vmatprep.mubr.f32.mxu0 0.0
    %558 = vmatmul.mubr.f32.gmra.mrb[0].mxu0 %v124
    %v559 = vpop.f32.mrb[0].mxu0
    %v560 = vadd.f32 0.0, %v559
    %v561 = vpop.f32.mrb[0].mxu0
    %v562 = vadd.f32 0.0, %v561
    %563 = vmatprep.mubr.f32.mxu0 0.0
    %564 = vmatmul.mubr.f32.gmra.mrb[0].mxu0 %v125
    %v565 = vpop.f32.mrb[0].mxu0
    %v566 = vadd.f32 0.0, %v565
    %v567 = vpop.f32.mrb[0].mxu0
    %v568 = vadd.f32 0.0, %v567
    %569 = vmatprep.mubr.f32.mxu0 0.0
    %570 = vmatmul.mubr.f32.gmra.mrb[0].mxu0 %v126
    %v571 = vpop.f32.mrb[0].mxu0
    %v572 = vadd.f32 0.0, %v571
    %v573 = vpop.f32.mrb[0].mxu0
    %v574 = vadd.f32 0.0, %v573
    %575 = vmatprep.mubr.f32.mxu0 0.0
    %576 = vmatmul.mubr.f32.gmra.mrb[0].mxu0 %v127
    %v577 = vpop.f32.mrb[0].mxu0
    %v578 = vadd.f32 0.0, %v577
    %v579 = vpop.f32.mrb[0].mxu0
    %v580 = vadd.f32 0.0, %v579
    %581 = vmatprep.mubr.f32.mxu0 0.0
    %582 = vmatmul.mubr.f32.gmra.mrb[0].mxu0 %v128
    %v583 = vpop.f32.mrb[0].mxu0
    %v584 = vadd.f32 0.0, %v583
    %v585 = vpop.f32.mrb[0].mxu0
    %v586 = vadd.f32 0.0, %v585
    %587 = vmatprep.mubr.f32.mxu0 0.0
    %588 = vmatmul.mubr.f32.gmra.mrb[0].mxu0 %v129
    %v589 = vpop.f32.mrb[0].mxu0
    %v590 = vadd.f32 0.0, %v589
    %v591 = vpop.f32.mrb[0].mxu0
    %v592 = vadd.f32 0.0, %v591
    %593 = vmatprep.mubr.f32.mxu0 0.0
    %594 = vmatmul.mubr.f32.gmra.mrb[0].mxu0 %v130
    %v595 = vpop.f32.mrb[0].mxu0
    %v596 = vadd.f32 0.0, %v595
    %v597 = vpop.f32.mrb[0].mxu0
    %v598 = vadd.f32 0.0, %v597
    %599 = vmatprep.mubr.f32.mxu0 0.0
    %600 = vmatmul.mubr.f32.gmra.mrb[0].mxu0 %v131
    %v601 = vpop.f32.mrb[0].mxu0
    %v602 = vadd.f32 0.0, %v601
    %v603 = vpop.f32.mrb[0].mxu0
    %v604 = vadd.f32 0.0, %v603
    %605 = vmatprep.mubr.f32.mxu0 0.0
    %606 = vmatmul.mubr.f32.gmra.mrb[0].mxu0 %v132
    %v607 = vpop.f32.mrb[0].mxu0
    %v608 = vadd.f32 0.0, %v607
    %v609 = vpop.f32.mrb[0].mxu0
    %v610 = vadd.f32 0.0, %v609
    %611 = vmatprep.mubr.f32.mxu0 0.0
    %612 = vmatmul.mubr.f32.gmra.mrb[0].mxu0 %v133
    %v613 = vpop.f32.mrb[0].mxu0
    %v614 = vadd.f32 0.0, %v613
    %v615 = vpop.f32.mrb[0].mxu0
    %v616 = vadd.f32 0.0, %v615
    %617 = vmatprep.mubr.f32.mxu0 0.0
    %618 = vmatmul.mubr.f32.gmra.mrb[0].mxu0 %v134
    %v619 = vpop.f32.mrb[0].mxu0
    %v620 = vadd.f32 0.0, %v619
    %v621 = vpop.f32.mrb[0].mxu0
    %v622 = vadd.f32 0.0, %v621
    %623 = vmatprep.mubr.f32.mxu0 0.0
    %624 = vmatmul.mubr.f32.gmra.mrb[0].mxu0 %v135
    %v625 = vpop.f32.mrb[0].mxu0
    %v626 = vadd.f32 0.0, %v625
    %v627 = vpop.f32.mrb[0].mxu0
    %v628 = vadd.f32 0.0, %v627
    %629 = vmatprep.mubr.f32.mxu0 0.0
    %630 = vmatmul.mubr.f32.gmra.mrb[0].mxu0 %v136
    %v631 = vpop.f32.mrb[0].mxu0
    %v632 = vadd.f32 0.0, %v631
    %v633 = vpop.f32.mrb[0].mxu0
    %v634 = vadd.f32 0.0, %v633
    %635 = vmatprep.mubr.f32.mxu0 0.0
    %636 = vmatmul.mubr.f32.gmra.mrb[0].mxu0 %v137
    %v637 = vpop.f32.mrb[0].mxu0
    %v638 = vadd.f32 0.0, %v637
    %v639 = vpop.f32.mrb[0].mxu0
    %v640 = vadd.f32 0.0, %v639
    %641 = vmatprep.mubr.f32.mxu0 0.0
    %642 = vmatmul.mubr.f32.gmra.mrb[0].mxu0 %v138
    %v643 = vpop.f32.mrb[0].mxu0
    %v644 = vadd.f32 0.0, %v643
    %v645 = vpop.f32.mrb[0].mxu0
    %v646 = vadd.f32 0.0, %v645
    %647 = vmatprep.mubr.f32.mxu0 0.0
    %648 = vmatmul.mubr.f32.gmra.mrb[0].mxu0 %v139
    %v649 = vpop.f32.mrb[0].mxu0
    %v650 = vadd.f32 0.0, %v649
    %v651 = vpop.f32.mrb[0].mxu0
    %v652 = vadd.f32 0.0, %v651
    %653 = vdwg.mxu0
    %v654 = vadd.f32 %v429, %v560
    %v655 = vadd.f32 %v430, %v562
    %v656 = vadd.f32 %v431, %v566
    %v657 = vadd.f32 %v432, %v568
    %v658 = vadd.f32 %v433, %v572
    %v659 = vadd.f32 %v434, %v574
    %v660 = vadd.f32 %v435, %v578
    %v661 = vadd.f32 %v436, %v580
    %v662 = vadd.f32 %v437, %v584
    %v663 = vadd.f32 %v438, %v586
    %v664 = vadd.f32 %v439, %v590
    %v665 = vadd.f32 %v440, %v592
    %v666 = vadd.f32 %v441, %v596
    %v667 = vadd.f32 %v442, %v598
    %v668 = vadd.f32 %v443, %v602
    %v669 = vadd.f32 %v444, %v604
    %v670 = vadd.f32 %v445, %v608
    %v671 = vadd.f32 %v446, %v610
    %v672 = vadd.f32 %v447, %v614
    %v673 = vadd.f32 %v448, %v616
    %v674 = vadd.f32 %v449, %v620
    %v675 = vadd.f32 %v450, %v622
    %v676 = vadd.f32 %v451, %v626
    %v677 = vadd.f32 %v452, %v628
    %v678 = vadd.f32 %v453, %v632
    %v679 = vadd.f32 %v454, %v634
    %v680 = vadd.f32 %v455, %v638
    %v681 = vadd.f32 %v456, %v640
    %v682 = vadd.f32 %v457, %v644
    %v683 = vadd.f32 %v458, %v646
    %v684 = vadd.f32 %v459, %v650
    %v685 = vadd.f32 %v460, %v652
    %686 = vst [vmem:[#allocation3] sm:$0xff] %v654
    %687 = vst [vmem:[#allocation3 + $0x8] sm:$0xff] %v655
    %688 = vst [vmem:[#allocation3 + $0x10] sm:$0xff] %v656
    %689 = vst [vmem:[#allocation3 + $0x18] sm:$0xff] %v657
    %690 = vst [vmem:[#allocation3 + $0x20] sm:$0xff] %v658
    %691 = vst [vmem:[#allocation3 + $0x28] sm:$0xff] %v659
    %692 = vst [vmem:[#allocation3 + $0x30] sm:$0xff] %v660
    %693 = vst [vmem:[#allocation3 + $0x38] sm:$0xff] %v661
    %694 = vst [vmem:[#allocation3 + $0x40] sm:$0xff] %v662
    %695 = vst [vmem:[#allocation3 + $0x48] sm:$0xff] %v663
    %696 = vst [vmem:[#allocation3 + $0x50] sm:$0xff] %v664
    %697 = vst [vmem:[#allocation3 + $0x58] sm:$0xff] %v665
    %698 = vst [vmem:[#allocation3 + $0x60] sm:$0xff] %v666
    %699 = vst [vmem:[#allocation3 + $0x68] sm:$0xff] %v667
    %700 = vst [vmem:[#allocation3 + $0x70] sm:$0xff] %v668
    %701 = vst [vmem:[#allocation3 + $0x78] sm:$0xff] %v669
    %702 = vst [vmem:[#allocation3 + $0x80] sm:$0xff] %v670
    %703 = vst [vmem:[#allocation3 + $0x88] sm:$0xff] %v671
    %704 = vst [vmem:[#allocation3 + $0x90] sm:$0xff] %v672
    %705 = vst [vmem:[#allocation3 + $0x98] sm:$0xff] %v673
    %706 = vst [vmem:[#allocation3 + $0xa0] sm:$0xff] %v674
    %707 = vst [vmem:[#allocation3 + $0xa8] sm:$0xff] %v675
    %708 = vst [vmem:[#allocation3 + $0xb0] sm:$0xff] %v676
    %709 = vst [vmem:[#allocation3 + $0xb8] sm:$0xff] %v677
    %710 = vst [vmem:[#allocation3 + $0xc0] sm:$0xff] %v678
    %711 = vst [vmem:[#allocation3 + $0xc8] sm:$0xff] %v679
    %712 = vst [vmem:[#allocation3 + $0xd0] sm:$0xff] %v680
    %713 = vst [vmem:[#allocation3 + $0xd8] sm:$0xff] %v681
    %714 = vst [vmem:[#allocation3 + $0xe0] sm:$0xff] %v682
    %715 = vst [vmem:[#allocation3 + $0xe8] sm:$0xff] %v683
    %716 = vst [vmem:[#allocation3 + $0xf0] sm:$0xff] %v684
    %717 = vst [vmem:[#allocation3 + $0xf8] sm:$0xff] %v685
    // Predicated region
    $region30: #{tpu_custom_call.1} parent=1 // pred_check
      %p718 = pneg %p56
    $region31: #{tpu_custom_call.1} parent=1 // pred_check_branch
      %720 = sbr.rel (%p718) target = $region33
    $region32: #{tpu_custom_call.1} parent=1 // pred_region
      %v721 = vld [vmem:[#allocation2] sm:$0xff]
      %v722 = vld [vmem:[#allocation2 + $0x8] sm:$0xff]
      %v723 = vld [vmem:[#allocation2 + $0x10] sm:$0xff]
      %v724 = vld [vmem:[#allocation2 + $0x18] sm:$0xff]
      %v725 = vld [vmem:[#allocation2 + $0x20] sm:$0xff]
      %v726 = vld [vmem:[#allocation2 + $0x28] sm:$0xff]
      %v727 = vld [vmem:[#allocation2 + $0x30] sm:$0xff]
      %v728 = vld [vmem:[#allocation2 + $0x38] sm:$0xff]
      %v729 = vld [vmem:[#allocation2 + $0x40] sm:$0xff]
      %v730 = vld [vmem:[#allocation2 + $0x48] sm:$0xff]
      %v731 = vld [vmem:[#allocation2 + $0x50] sm:$0xff]
      %v732 = vld [vmem:[#allocation2 + $0x58] sm:$0xff]
      %v733 = vld [vmem:[#allocation2 + $0x60] sm:$0xff]
      %v734 = vld [vmem:[#allocation2 + $0x68] sm:$0xff]
      %v735 = vld [vmem:[#allocation2 + $0x70] sm:$0xff]
      %v736 = vld [vmem:[#allocation2 + $0x78] sm:$0xff]
      %v737 = vld [vmem:[#allocation2 + $0x80] sm:$0xff]
      %v738 = vld [vmem:[#allocation2 + $0x88] sm:$0xff]
      %v739 = vld [vmem:[#allocation2 + $0x90] sm:$0xff]
      %v740 = vld [vmem:[#allocation2 + $0x98] sm:$0xff]
      %v741 = vld [vmem:[#allocation2 + $0xa0] sm:$0xff]
      %v742 = vld [vmem:[#allocation2 + $0xa8] sm:$0xff]
      %v743 = vld [vmem:[#allocation2 + $0xb0] sm:$0xff]
      %v744 = vld [vmem:[#allocation2 + $0xb8] sm:$0xff]
      %v745 = vld [vmem:[#allocation2 + $0xc0] sm:$0xff]
      %v746 = vld [vmem:[#allocation2 + $0xc8] sm:$0xff]
      %v747 = vld [vmem:[#allocation2 + $0xd0] sm:$0xff]
      %v748 = vld [vmem:[#allocation2 + $0xd8] sm:$0xff]
      %v749 = vld [vmem:[#allocation2 + $0xe0] sm:$0xff]
      %v750 = vld [vmem:[#allocation2 + $0xe8] sm:$0xff]
      %v751 = vld [vmem:[#allocation2 + $0xf0] sm:$0xff]
      %v752 = vld [vmem:[#allocation2 + $0xf8] sm:$0xff]
      %v753 = vsub.f32 0.0, %v721
      %v754 = vsub.f32 0.0, %v722
      %v755 = vsub.f32 0.0, %v723
      %v756 = vsub.f32 0.0, %v724
      %v757 = vsub.f32 0.0, %v725
      %v758 = vsub.f32 0.0, %v726
      %v759 = vsub.f32 0.0, %v727
      %v760 = vsub.f32 0.0, %v728
      %v761 = vsub.f32 0.0, %v729
      %v762 = vsub.f32 0.0, %v730
      %v763 = vsub.f32 0.0, %v731
      %v764 = vsub.f32 0.0, %v732
      %v765 = vsub.f32 0.0, %v733
      %v766 = vsub.f32 0.0, %v734
      %v767 = vsub.f32 0.0, %v735
      %v768 = vsub.f32 0.0, %v736
      %v769 = vsub.f32 0.0, %v737
      %v770 = vsub.f32 0.0, %v738
      %v771 = vsub.f32 0.0, %v739
      %v772 = vsub.f32 0.0, %v740
      %v773 = vsub.f32 0.0, %v741
      %v774 = vsub.f32 0.0, %v742
      %v775 = vsub.f32 0.0, %v743
      %v776 = vsub.f32 0.0, %v744
      %v777 = vsub.f32 0.0, %v745
      %v778 = vsub.f32 0.0, %v746
      %v779 = vsub.f32 0.0, %v747
      %v780 = vsub.f32 0.0, %v748
      %v781 = vsub.f32 0.0, %v749
      %v782 = vsub.f32 0.0, %v750
      %v783 = vsub.f32 0.0, %v751
      %v784 = vsub.f32 0.0, %v752
      %v785 = vmul.f32 %v753, 1.442695
      %v786 = vpow.pop %v785
      %v787 = vmul.f32 %v754, 1.442695
      %v788 = vpow.pop %v787
      %v789 = vmul.f32 %v755, 1.442695
      %v790 = vpow.pop %v789
      %v791 = vmul.f32 %v756, 1.442695
      %v792 = vpow.pop %v791
      %v793 = vmul.f32 %v757, 1.442695
      %v794 = vpow.pop %v793
      %v795 = vmul.f32 %v758, 1.442695
      %v796 = vpow.pop %v795
      %v797 = vmul.f32 %v759, 1.442695
      %v798 = vpow.pop %v797
      %v799 = vmul.f32 %v760, 1.442695
      %v800 = vpow.pop %v799
      %v801 = vmul.f32 %v761, 1.442695
      %v802 = vpow.pop %v801
      %v803 = vmul.f32 %v762, 1.442695
      %v804 = vpow.pop %v803
      %v805 = vmul.f32 %v763, 1.442695
      %v806 = vpow.pop %v805
      %v807 = vmul.f32 %v764, 1.442695
      %v808 = vpow.pop %v807
      %v809 = vmul.f32 %v765, 1.442695
      %v810 = vpow.pop %v809
      %v811 = vmul.f32 %v766, 1.442695
      %v812 = vpow.pop %v811
      %v813 = vmul.f32 %v767, 1.442695
      %v814 = vpow.pop %v813
      %v815 = vmul.f32 %v768, 1.442695
      %v816 = vpow.pop %v815
      %v817 = vmul.f32 %v769, 1.442695
      %v818 = vpow.pop %v817
      %v819 = vmul.f32 %v770, 1.442695
      %v820 = vpow.pop %v819
      %v821 = vmul.f32 %v771, 1.442695
      %v822 = vpow.pop %v821
      %v823 = vmul.f32 %v772, 1.442695
      %v824 = vpow.pop %v823
      %v825 = vmul.f32 %v773, 1.442695
      %v826 = vpow.pop %v825
      %v827 = vmul.f32 %v774, 1.442695
      %v828 = vpow.pop %v827
      %v829 = vmul.f32 %v775, 1.442695
      %v830 = vpow.pop %v829
      %v831 = vmul.f32 %v776, 1.442695
      %v832 = vpow.pop %v831
      %v833 = vmul.f32 %v777, 1.442695
      %v834 = vpow.pop %v833
      %v835 = vmul.f32 %v778, 1.442695
      %v836 = vpow.pop %v835
      %v837 = vmul.f32 %v779, 1.442695
      %v838 = vpow.pop %v837
      %v839 = vmul.f32 %v780, 1.442695
      %v840 = vpow.pop %v839
      %v841 = vmul.f32 %v781, 1.442695
      %v842 = vpow.pop %v841
      %v843 = vmul.f32 %v782, 1.442695
      %v844 = vpow.pop %v843
      %v845 = vmul.f32 %v783, 1.442695
      %v846 = vpow.pop %v845
      %v847 = vmul.f32 %v784, 1.442695
      %v848 = vpow.pop %v847
      %v849 = vadd.f32 %v786, 1.0
      %v850 = vadd.f32 %v788, 1.0
      %v851 = vadd.f32 %v790, 1.0
      %v852 = vadd.f32 %v792, 1.0
      %v853 = vadd.f32 %v794, 1.0
      %v854 = vadd.f32 %v796, 1.0
      %v855 = vadd.f32 %v798, 1.0
      %v856 = vadd.f32 %v800, 1.0
      %v857 = vadd.f32 %v802, 1.0
      %v858 = vadd.f32 %v804, 1.0
      %v859 = vadd.f32 %v806, 1.0
      %v860 = vadd.f32 %v808, 1.0
      %v861 = vadd.f32 %v810, 1.0
      %v862 = vadd.f32 %v812, 1.0
      %v863 = vadd.f32 %v814, 1.0
      %v864 = vadd.f32 %v816, 1.0
      %v865 = vadd.f32 %v818, 1.0
      %v866 = vadd.f32 %v820, 1.0
      %v867 = vadd.f32 %v822, 1.0
      %v868 = vadd.f32 %v824, 1.0
      %v869 = vadd.f32 %v826, 1.0
      %v870 = vadd.f32 %v828, 1.0
      %v871 = vadd.f32 %v830, 1.0
      %v872 = vadd.f32 %v832, 1.0
      %v873 = vadd.f32 %v834, 1.0
      %v874 = vadd.f32 %v836, 1.0
      %v875 = vadd.f32 %v838, 1.0
      %v876 = vadd.f32 %v840, 1.0
      %v877 = vadd.f32 %v842, 1.0
      %v878 = vadd.f32 %v844, 1.0
      %v879 = vadd.f32 %v846, 1.0
      %v880 = vadd.f32 %v848, 1.0
      %v881 = vrcp.pop %v849
      %v882 = vmul.f32 1.0, %v881
      %v883 = vrcp.pop %v850
      %v884 = vmul.f32 1.0, %v883
      %v885 = vrcp.pop %v851
      %v886 = vmul.f32 1.0, %v885
      %v887 = vrcp.pop %v852
      %v888 = vmul.f32 1.0, %v887
      %v889 = vrcp.pop %v853
      %v890 = vmul.f32 1.0, %v889
      %v891 = vrcp.pop %v854
      %v892 = vmul.f32 1.0, %v891
      %v893 = vrcp.pop %v855
      %v894 = vmul.f32 1.0, %v893
      %v895 = vrcp.pop %v856
      %v896 = vmul.f32 1.0, %v895
      %v897 = vrcp.pop %v857
      %v898 = vmul.f32 1.0, %v897
      %v899 = vrcp.pop %v858
      %v900 = vmul.f32 1.0, %v899
      %v901 = vrcp.pop %v859
      %v902 = vmul.f32 1.0, %v901
      %v903 = vrcp.pop %v860
      %v904 = vmul.f32 1.0, %v903
      %v905 = vrcp.pop %v861
      %v906 = vmul.f32 1.0, %v905
      %v907 = vrcp.pop %v862
      %v908 = vmul.f32 1.0, %v907
      %v909 = vrcp.pop %v863
      %v910 = vmul.f32 1.0, %v909
      %v911 = vrcp.pop %v864
      %v912 = vmul.f32 1.0, %v911
      %v913 = vrcp.pop %v865
      %v914 = vmul.f32 1.0, %v913
      %v915 = vrcp.pop %v866
      %v916 = vmul.f32 1.0, %v915
      %v917 = vrcp.pop %v867
      %v918 = vmul.f32 1.0, %v917
      %v919 = vrcp.pop %v868
      %v920 = vmul.f32 1.0, %v919
      %v921 = vrcp.pop %v869
      %v922 = vmul.f32 1.0, %v921
      %v923 = vrcp.pop %v870
      %v924 = vmul.f32 1.0, %v923
      %v925 = vrcp.pop %v871
      %v926 = vmul.f32 1.0, %v925
      %v927 = vrcp.pop %v872
      %v928 = vmul.f32 1.0, %v927
      %v929 = vrcp.pop %v873
      %v930 = vmul.f32 1.0, %v929
      %v931 = vrcp.pop %v874
      %v932 = vmul.f32 1.0, %v931
      %v933 = vrcp.pop %v875
      %v934 = vmul.f32 1.0, %v933
      %v935 = vrcp.pop %v876
      %v936 = vmul.f32 1.0, %v935
      %v937 = vrcp.pop %v877
      %v938 = vmul.f32 1.0, %v937
      %v939 = vrcp.pop %v878
      %v940 = vmul.f32 1.0, %v939
      %v941 = vrcp.pop %v879
      %v942 = vmul.f32 1.0, %v941
      %v943 = vrcp.pop %v880
      %v944 = vmul.f32 1.0, %v943
      %v945 = vmul.f32 %v721, %v882
      %v946 = vmul.f32 %v722, %v884
      %v947 = vmul.f32 %v723, %v886
      %v948 = vmul.f32 %v724, %v888
      %v949 = vmul.f32 %v725, %v890
      %v950 = vmul.f32 %v726, %v892
      %v951 = vmul.f32 %v727, %v894
      %v952 = vmul.f32 %v728, %v896
      %v953 = vmul.f32 %v729, %v898
      %v954 = vmul.f32 %v730, %v900
      %v955 = vmul.f32 %v731, %v902
      %v956 = vmul.f32 %v732, %v904
      %v957 = vmul.f32 %v733, %v906
      %v958 = vmul.f32 %v734, %v908
      %v959 = vmul.f32 %v735, %v910
      %v960 = vmul.f32 %v736, %v912
      %v961 = vmul.f32 %v737, %v914
      %v962 = vmul.f32 %v738, %v916
      %v963 = vmul.f32 %v739, %v918
      %v964 = vmul.f32 %v740, %v920
      %v965 = vmul.f32 %v741, %v922
      %v966 = vmul.f32 %v742, %v924
      %v967 = vmul.f32 %v743, %v926
      %v968 = vmul.f32 %v744, %v928
      %v969 = vmul.f32 %v745, %v930
      %v970 = vmul.f32 %v746, %v932
      %v971 = vmul.f32 %v747, %v934
      %v972 = vmul.f32 %v748, %v936
      %v973 = vmul.f32 %v749, %v938
      %v974 = vmul.f32 %v750, %v940
      %v975 = vmul.f32 %v751, %v942
      %v976 = vmul.f32 %v752, %v944
      %v977 = vld [vmem:[#allocation3] sm:$0xff]
      %v978 = vld [vmem:[#allocation3 + $0x8] sm:$0xff]
      %v979 = vld [vmem:[#allocation3 + $0x10] sm:$0xff]
      %v980 = vld [vmem:[#allocation3 + $0x18] sm:$0xff]
      %v981 = vld [vmem:[#allocation3 + $0x20] sm:$0xff]
      %v982 = vld [vmem:[#allocation3 + $0x28] sm:$0xff]
      %v983 = vld [vmem:[#allocation3 + $0x30] sm:$0xff]
      %v984 = vld [vmem:[#allocation3 + $0x38] sm:$0xff]
      %v985 = vld [vmem:[#allocation3 + $0x40] sm:$0xff]
      %v986 = vld [vmem:[#allocation3 + $0x48] sm:$0xff]
      %v987 = vld [vmem:[#allocation3 + $0x50] sm:$0xff]
      %v988 = vld [vmem:[#allocation3 + $0x58] sm:$0xff]
      %v989 = vld [vmem:[#allocation3 + $0x60] sm:$0xff]
      %v990 = vld [vmem:[#allocation3 + $0x68] sm:$0xff]
      %v991 = vld [vmem:[#allocation3 + $0x70] sm:$0xff]
      %v992 = vld [vmem:[#allocation3 + $0x78] sm:$0xff]
      %v993 = vld [vmem:[#allocation3 + $0x80] sm:$0xff]
      %v994 = vld [vmem:[#allocation3 + $0x88] sm:$0xff]
      %v995 = vld [vmem:[#allocation3 + $0x90] sm:$0xff]
      %v996 = vld [vmem:[#allocation3 + $0x98] sm:$0xff]
      %v997 = vld [vmem:[#allocation3 + $0xa0] sm:$0xff]
      %v998 = vld [vmem:[#allocation3 + $0xa8] sm:$0xff]
      %v999 = vld [vmem:[#allocation3 + $0xb0] sm:$0xff]
      %v1000 = vld [vmem:[#allocation3 + $0xb8] sm:$0xff]
      %v1001 = vld [vmem:[#allocation3 + $0xc0] sm:$0xff]
      %v1002 = vld [vmem:[#allocation3 + $0xc8] sm:$0xff]
      %v1003 = vld [vmem:[#allocation3 + $0xd0] sm:$0xff]
      %v1004 = vld [vmem:[#allocation3 + $0xd8] sm:$0xff]
      %v1005 = vld [vmem:[#allocation3 + $0xe0] sm:$0xff]
      %v1006 = vld [vmem:[#allocation3 + $0xe8] sm:$0xff]
      %v1007 = vld [vmem:[#allocation3 + $0xf0] sm:$0xff]
      %v1008 = vld [vmem:[#allocation3 + $0xf8] sm:$0xff]
      %v1009 = vmul.f32 %v945, %v977
      %v1010 = vmul.f32 %v946, %v978
      %v1011 = vmul.f32 %v947, %v979
      %v1012 = vmul.f32 %v948, %v980
      %v1013 = vmul.f32 %v949, %v981
      %v1014 = vmul.f32 %v950, %v982
      %v1015 = vmul.f32 %v951, %v983
      %v1016 = vmul.f32 %v952, %v984
      %v1017 = vmul.f32 %v953, %v985
      %v1018 = vmul.f32 %v954, %v986
      %v1019 = vmul.f32 %v955, %v987
      %v1020 = vmul.f32 %v956, %v988
      %v1021 = vmul.f32 %v957, %v989
      %v1022 = vmul.f32 %v958, %v990
      %v1023 = vmul.f32 %v959, %v991
      %v1024 = vmul.f32 %v960, %v992
      %v1025 = vmul.f32 %v961, %v993
      %v1026 = vmul.f32 %v962, %v994
      %v1027 = vmul.f32 %v963, %v995
      %v1028 = vmul.f32 %v964, %v996
      %v1029 = vmul.f32 %v965, %v997
      %v1030 = vmul.f32 %v966, %v998
      %v1031 = vmul.f32 %v967, %v999
      %v1032 = vmul.f32 %v968, %v1000
      %v1033 = vmul.f32 %v969, %v1001
      %v1034 = vmul.f32 %v970, %v1002
      %v1035 = vmul.f32 %v971, %v1003
      %v1036 = vmul.f32 %v972, %v1004
      %v1037 = vmul.f32 %v973, %v1005
      %v1038 = vmul.f32 %v974, %v1006
      %v1039 = vmul.f32 %v975, %v1007
      %v1040 = vmul.f32 %v976, %v1008
      %1041 = vst [vmem:[#allocation10] sm:$0xff] %v1009
      %1042 = vst [vmem:[#allocation10 + $0x8] sm:$0xff] %v1010
      %1043 = vst [vmem:[#allocation10 + $0x10] sm:$0xff] %v1011
      %1044 = vst [vmem:[#allocation10 + $0x18] sm:$0xff] %v1012
      %1045 = vst [vmem:[#allocation10 + $0x20] sm:$0xff] %v1013
      %1046 = vst [vmem:[#allocation10 + $0x28] sm:$0xff] %v1014
      %1047 = vst [vmem:[#allocation10 + $0x30] sm:$0xff] %v1015
      %1048 = vst [vmem:[#allocation10 + $0x38] sm:$0xff] %v1016
      %1049 = vst [vmem:[#allocation10 + $0x40] sm:$0xff] %v1017
      %1050 = vst [vmem:[#allocation10 + $0x48] sm:$0xff] %v1018
      %1051 = vst [vmem:[#allocation10 + $0x50] sm:$0xff] %v1019
      %1052 = vst [vmem:[#allocation10 + $0x58] sm:$0xff] %v1020
      %1053 = vst [vmem:[#allocation10 + $0x60] sm:$0xff] %v1021
      %1054 = vst [vmem:[#allocation10 + $0x68] sm:$0xff] %v1022
      %1055 = vst [vmem:[#allocation10 + $0x70] sm:$0xff] %v1023
      %1056 = vst [vmem:[#allocation10 + $0x78] sm:$0xff] %v1024
      %1057 = vst [vmem:[#allocation10 + $0x80] sm:$0xff] %v1025
      %1058 = vst [vmem:[#allocation10 + $0x88] sm:$0xff] %v1026
      %1059 = vst [vmem:[#allocation10 + $0x90] sm:$0xff] %v1027
      %1060 = vst [vmem:[#allocation10 + $0x98] sm:$0xff] %v1028
      %1061 = vst [vmem:[#allocation10 + $0xa0] sm:$0xff] %v1029
      %1062 = vst [vmem:[#allocation10 + $0xa8] sm:$0xff] %v1030
      %1063 = vst [vmem:[#allocation10 + $0xb0] sm:$0xff] %v1031
      %1064 = vst [vmem:[#allocation10 + $0xb8] sm:$0xff] %v1032
      %1065 = vst [vmem:[#allocation10 + $0xc0] sm:$0xff] %v1033
      %1066 = vst [vmem:[#allocation10 + $0xc8] sm:$0xff] %v1034
      %1067 = vst [vmem:[#allocation10 + $0xd0] sm:$0xff] %v1035
      %1068 = vst [vmem:[#allocation10 + $0xd8] sm:$0xff] %v1036
      %1069 = vst [vmem:[#allocation10 + $0xe0] sm:$0xff] %v1037
      %1070 = vst [vmem:[#allocation10 + $0xe8] sm:$0xff] %v1038
      %1071 = vst [vmem:[#allocation10 + $0xf0] sm:$0xff] %v1039
      %1072 = vst [vmem:[#allocation10 + $0xf8] sm:$0xff] %v1040
    $region33: #{tpu_custom_call.1} parent=1 // pred_fallthru
      _
    // Predicated region
    $region34: #{tpu_custom_call.1} parent=1 // pred_check
      _
    $region35: #{tpu_custom_call.1} parent=1 // pred_check_branch
      %1074 = sbr.rel (0) target = $region37
    $region36: #{tpu_custom_call.1} parent=1 // pred_region
      %s1076 = ssub.s32 4096, 4096
      %1077 = vsyncadd [#allocation6], %s1076
      %s1078 = sshll.u32 [#allocation10], 4
      %s1079 = int_to_ptr.vmem [resolvable:$true] %s1078
      %1084 = dma.vmem_to_hbm [thread:$0]  %s1079, 4096, %s3, [#allocation6], 256, 256, 16
    $region37: #{tpu_custom_call.1} parent=1 // pred_fallthru
      _
    // Predicated region
    $region38: #{tpu_custom_call.1} parent=1 // pred_check
      _
    $region39: #{tpu_custom_call.1} parent=1 // pred_check_branch
      %1086 = sbr.rel (0) target = $region41
    $region40: #{tpu_custom_call.1} parent=1 // pred_region
      %1087 = dma.done [#allocation6], 4096
    $region41: #{tpu_custom_call.1} parent=1 // pred_fallthru
      _
    %1088 = vsyncpa [#allocation5], 1
    %1089 = vsyncpa [#allocation8], 1
    %1090 = vsyncpa [#allocation6], 1

</llo_original>
